<compile_context>
chip_gen: v5e
topology: v5e:2x2
jax: 0.10.0
libtpu: 0.0.40
codegen_flags: <defaults>
</compile_context>

<pallas_src>
import numpy as np
import jax
import jax.numpy as jnp
from jax.experimental import pallas as pl
from jax.experimental.pallas import tpu as pltpu


def _bilinear_matrix(in_size, out_size):
    """Row/col interpolation matrix matching F.interpolate(mode='bilinear', align_corners=False)."""
    if in_size == out_size:
        return np.eye(out_size, dtype=np.float32)
    scale = in_size / out_size
    j = np.arange(out_size)
    src = (j + 0.5) * scale - 0.5
    src = np.maximum(src, 0.0)
    i0 = np.minimum(np.floor(src).astype(np.int64), in_size - 1)
    i1 = np.minimum(i0 + 1, in_size - 1)
    l1 = (src - i0).astype(np.float32)
    l0 = 1.0 - l1
    m = np.zeros((out_size, in_size), dtype=np.float32)
    m[j, i0] += l0
    m[j, i1] += l1
    return m


def _avgpool3_matrix(n):
    """1-D factor of AvgPool2d(kernel=3, stride=1, padding=1, count_include_pad=True)."""
    m = np.zeros((n, n), dtype=np.float32)
    for r in range(n):
        for k in (r - 1, r, r + 1):
            if 0 <= k < n:
                m[r, k] = 1.0 / 3.0
    return m


def _hr_head_kernel(x0_ref, x1_ref, x2_ref, x3_ref,
                    w0_ref, w1_ref, w2_ref, w3_ref,
                    k1_ref, k2_ref, k3_ref,
                    kpool_ref, bias_ref, o_ref):
    """One batch element per grid step; everything is a plain 2-D MXU matmul.

    x*_ref    : (1, c_i, s_i)  branch features, native dtype, spatial flattened (H-major)
    w*_ref    : (O, c_i)       1x1-conv weight slice for branch i        (input dtype)
    k*_ref    : (s_i, S)       kron(bilinear_H, bilinear_W)^T upsample   (input dtype)
    kpool_ref : (S, S)         kron(pool_H, pool_W)^T  3x3 avg-pool (/9) (input dtype)
    bias_ref  : (O, 1)         f32 bias
    o_ref     : (1, O, S)      lane-dense output block (S = H*W)
    """
    # Full-resolution branch: channel mix only (its resize is the identity).
    acc = jnp.dot(w0_ref[...], x0_ref[0], preferred_element_type=jnp.float32)

    # Down-sampled branches: channel mix first (c_i -> O, tiny), then ONE
    # lane-dense spatial matmul against the kron-folded upsample matrix.
    for x_ref, w_ref, k_ref in ((x1_ref, w1_ref, k1_ref),
                                (x2_ref, w2_ref, k2_ref),
                                (x3_ref, w3_ref, k3_ref)):
        z = jnp.dot(w_ref[...], x_ref[0], preferred_element_type=jnp.float32)
        acc = acc + jnp.dot(z.astype(k_ref.dtype), k_ref[...],
                            preferred_element_type=jnp.float32)

    # 3x3 average pool (count_include_pad=True) applied once to the accumulated
    # full-resolution map: a single (O, S) @ (S, S) lane-dense MXU matmul.
    pooled = jnp.dot(acc.astype(kpool_ref.dtype), kpool_ref[...],
                     preferred_element_type=jnp.float32)

    o_ref[0] = (pooled + bias_ref[...]).astype(o_ref.dtype)


def high_resolution_head_with_pooling(xs, weight, bias):
    """xs: list of 4 NCHW arrays (x0 at full res); weight: (O, sum c_i); bias: (O,)."""
    assert len(xs) == 4
    B = int(xs[0].shape[0])
    H, W = int(xs[0].shape[2]), int(xs[0].shape[3])
    S = H * W
    num_out = int(weight.shape[0])
    chans = [int(x.shape[1]) for x in xs]
    assert int(weight.shape[1]) == sum(chans)
    op_dtype = xs[0].dtype      # matmul-operand dtype (bf16 stays bf16; accumulate in f32)
    out_dtype = xs[0].dtype

    # Host-built tiny transform matrices.
    ph = _avgpool3_matrix(H)
    pw = _avgpool3_matrix(W)
    kpool = jnp.asarray(np.kron(ph, pw).T, dtype=op_dtype)            # (S, S)

    xs_flat, w_slices, k_mats = [], [], []
    off = 0
    for i, x in enumerate(xs):
        c, h, w = int(x.shape[1]), int(x.shape[2]), int(x.shape[3])
        xs_flat.append(x.reshape(B, c, h * w))                        # cheap trailing-dim merge
        w_slices.append(weight[:, off:off + c].astype(op_dtype))      # (O, c_i)
        if i > 0:
            rh = _bilinear_matrix(h, H)
            rw = _bilinear_matrix(w, W)
            k_mats.append(jnp.asarray(np.kron(rh, rw).T, dtype=op_dtype))  # (h*w, S)
        off += c
    bias2d = bias.astype(jnp.float32).reshape(num_out, 1)

    in_specs = []
    for xf in xs_flat:
        c, s = int(xf.shape[1]), int(xf.shape[2])
        in_specs.append(pl.BlockSpec((1, c, s), lambda b: (b, 0, 0)))
    for ws in w_slices:                                               # constant index maps:
        in_specs.append(pl.BlockSpec(tuple(ws.shape), lambda b: (0, 0)))
    for km in k_mats:                                                 # stay VMEM-resident
        in_specs.append(pl.BlockSpec(tuple(km.shape), lambda b: (0, 0)))
    in_specs.append(pl.BlockSpec((S, S), lambda b: (0, 0)))           # kpool
    in_specs.append(pl.BlockSpec((num_out, 1), lambda b: (0, 0)))     # bias

    # Advisory cost estimate (includes the small resident operands too).
    flops = 2 * B * num_out * S * S                                   # final pool matmul
    bytes_accessed = (B * num_out * S * jnp.dtype(out_dtype).itemsize
                      + int(kpool.size) * jnp.dtype(op_dtype).itemsize
                      + num_out * 4)
    for i, x in enumerate(xs):
        c = int(x.shape[1]); s = int(x.shape[2]) * int(x.shape[3])
        flops += 2 * B * num_out * c * s                              # channel mix
        bytes_accessed += int(x.size) * x.dtype.itemsize
        bytes_accessed += num_out * c * jnp.dtype(op_dtype).itemsize
        if i > 0:
            flops += 2 * B * num_out * s * S                          # kron upsample
            bytes_accessed += s * S * jnp.dtype(op_dtype).itemsize

    out_flat = pl.pallas_call(
        _hr_head_kernel,
        out_shape=jax.ShapeDtypeStruct((B, num_out, S), out_dtype),
        grid=(B,),
        in_specs=in_specs,
        out_specs=pl.BlockSpec((1, num_out, S), lambda b: (b, 0, 0)),
        compiler_params=pltpu.CompilerParams(
            dimension_semantics=("parallel",)),                       # B>=2 -> both v7x TCs
        cost_estimate=pl.CostEstimate(
            flops=int(flops), transcendentals=0,
            bytes_accessed=int(bytes_accessed)),
    )(*xs_flat, *w_slices, *k_mats, kpool, bias2d)

    # Lane-dense (B, O, H*W) kernel output; NCHW restored by a free metadata reshape.
    return out_flat.reshape(B, num_out, H, W)


def high_resolution_head_reference(xs, weight, bias):
    """Pure-JAX reference in the PyTorch op order: upsample -> concat -> pool -> conv."""
    H, W = int(xs[0].shape[2]), int(xs[0].shape[3])
    ups = []
    for x in xs:
        h, w = int(x.shape[2]), int(x.shape[3])
        rh = jnp.asarray(_bilinear_matrix(h, H))
        rw = jnp.asarray(_bilinear_matrix(w, W))
        ups.append(jnp.einsum('Hh,bchw,Ww->bcHW', rh, x.astype(jnp.float32), rw))
    cat = jnp.concatenate(ups, axis=1)
    ph = jnp.asarray(_avgpool3_matrix(H))
    pw = jnp.asarray(_avgpool3_matrix(W))
    pooled = jnp.einsum('Ii,bcij,Jj->bcIJ', ph, cat, pw)
    out = jnp.einsum('oc,bchw->bohw', weight.astype(jnp.float32), pooled)
    return out + bias.astype(jnp.float32)[None, :, None, None]


if __name__ == "__main__":
    B = 2
    backbone_channels = (4, 8, 16, 32)
    num_outputs = 5
    H = W = 16

    key = jax.random.PRNGKey(0)
    keys = jax.random.split(key, 6)
    xs = []
    for i, c in enumerate(backbone_channels):
        h, w = H // (2 ** i), W // (2 ** i)
        xs.append(jax.random.normal(keys[i], (B, c, h, w), dtype=jnp.float32))
    c_total = sum(backbone_channels)
    weight = jax.random.normal(keys[4], (num_outputs, c_total), dtype=jnp.float32) * 0.1
    bias = jax.random.normal(keys[5], (num_outputs,), dtype=jnp.float32) * 0.1

    out = high_resolution_head_with_pooling(xs, weight, bias)
    out = jax.block_until_ready(out)

    ref = high_resolution_head_reference(xs, weight, bias)
    assert out.shape == (B, num_outputs, H, W), out.shape
    max_err = float(jnp.max(jnp.abs(out - ref)))
    assert jnp.allclose(out, ref, atol=1e-4, rtol=1e-4), f"mismatch vs reference: {max_err}"

    print("KERNEL_OK")
</pallas_src>

<mosaic_0001>
module attributes {stable_mosaic.version = 11 : i64} {
  func.func @_hr_head_kernel(%arg0: i32, %arg1: memref<1x4x256xf32, #tpu.memory_space<vmem>>, %arg2: memref<1x8x64xf32, #tpu.memory_space<vmem>>, %arg3: memref<1x16x16xf32, #tpu.memory_space<vmem>>, %arg4: memref<1x32x4xf32, #tpu.memory_space<vmem>>, %arg5: memref<5x4xf32, #tpu.memory_space<vmem>>, %arg6: memref<5x8xf32, #tpu.memory_space<vmem>>, %arg7: memref<5x16xf32, #tpu.memory_space<vmem>>, %arg8: memref<5x32xf32, #tpu.memory_space<vmem>>, %arg9: memref<64x256xf32, #tpu.memory_space<vmem>>, %arg10: memref<16x256xf32, #tpu.memory_space<vmem>>, %arg11: memref<4x256xf32, #tpu.memory_space<vmem>>, %arg12: memref<256x256xf32, #tpu.memory_space<vmem>>, %arg13: memref<5x1xf32, #tpu.memory_space<vmem>>, %arg14: memref<1x5x256xf32, #tpu.memory_space<vmem>>) attributes {dimension_semantics = [#tpu.dimension_semantics<parallel>], iteration_bounds = array<i64: 2>, scalar_prefetch = 0 : i64, scratch_operands = 0 : i64, tpu.core_type = #tpu.core_type<tc>, window_params = [{transform_indices = @transform_0, window_bounds = array<i64: 1, 4, 256>}, {transform_indices = @transform_1, window_bounds = array<i64: 1, 8, 64>}, {transform_indices = @transform_2, window_bounds = array<i64: 1, 16, 16>}, {transform_indices = @transform_3, window_bounds = array<i64: 1, 32, 4>}, {pipeline_mode = #tpu.pipeline_mode<synchronous>, transform_indices = @transform_4, window_bounds = array<i64: 5, 4>}, {pipeline_mode = #tpu.pipeline_mode<synchronous>, transform_indices = @transform_5, window_bounds = array<i64: 5, 8>}, {pipeline_mode = #tpu.pipeline_mode<synchronous>, transform_indices = @transform_6, window_bounds = array<i64: 5, 16>}, {pipeline_mode = #tpu.pipeline_mode<synchronous>, transform_indices = @transform_7, window_bounds = array<i64: 5, 32>}, {pipeline_mode = #tpu.pipeline_mode<synchronous>, transform_indices = @transform_8, window_bounds = array<i64: 64, 256>}, {pipeline_mode = #tpu.pipeline_mode<synchronous>, transform_indices = @transform_9, window_bounds = array<i64: 16, 256>}, {pipeline_mode = #tpu.pipeline_mode<synchronous>, transform_indices = @transform_10, window_bounds = array<i64: 4, 256>}, {pipeline_mode = #tpu.pipeline_mode<synchronous>, transform_indices = @transform_11, window_bounds = array<i64: 256, 256>}, {pipeline_mode = #tpu.pipeline_mode<synchronous>, transform_indices = @transform_12, window_bounds = array<i64: 5, 1>}, {transform_indices = @transform_13, window_bounds = array<i64: 1, 5, 256>}]} {
    %c0 = arith.constant 0 : index
    %c0_0 = arith.constant 0 : index
    %0 = vector.load %arg5[%c0, %c0_0] : memref<5x4xf32, #tpu.memory_space<vmem>>, vector<5x4xf32>
    %c0_1 = arith.constant 0 : index
    %c0_2 = arith.constant 0 : index
    %c0_3 = arith.constant 0 : index
    %1 = vector.load %arg1[%c0_1, %c0_2, %c0_3] : memref<1x4x256xf32, #tpu.memory_space<vmem>>, vector<1x4x256xf32>
    %2 = vector.shape_cast %1 : vector<1x4x256xf32> to vector<4x256xf32>
    %cst = arith.constant dense<0.000000e+00> : vector<5x256xf32>
    %3 = tpu.matmul %0, %2, %cst {dimension_numbers = #tpu.dot_dimension_numbers<[1], [0], [0], [1], [0, 0, 1, 1], [], []>} : vector<5x4xf32>, vector<4x256xf32>, vector<5x256xf32> -> vector<5x256xf32>
    %c0_4 = arith.constant 0 : index
    %c0_5 = arith.constant 0 : index
    %4 = vector.load %arg6[%c0_4, %c0_5] : memref<5x8xf32, #tpu.memory_space<vmem>>, vector<5x8xf32>
    %c0_6 = arith.constant 0 : index
    %c0_7 = arith.constant 0 : index
    %c0_8 = arith.constant 0 : index
    %5 = vector.load %arg2[%c0_6, %c0_7, %c0_8] : memref<1x8x64xf32, #tpu.memory_space<vmem>>, vector<1x8x64xf32>
    %6 = vector.shape_cast %5 : vector<1x8x64xf32> to vector<8x64xf32>
    %cst_9 = arith.constant dense<0.000000e+00> : vector<5x64xf32>
    %7 = tpu.matmul %4, %6, %cst_9 {dimension_numbers = #tpu.dot_dimension_numbers<[1], [0], [0], [1], [0, 0, 1, 1], [], []>} : vector<5x8xf32>, vector<8x64xf32>, vector<5x64xf32> -> vector<5x64xf32>
    %c0_10 = arith.constant 0 : index
    %c0_11 = arith.constant 0 : index
    %8 = vector.load %arg9[%c0_10, %c0_11] : memref<64x256xf32, #tpu.memory_space<vmem>>, vector<64x256xf32>
    %cst_12 = arith.constant dense<0.000000e+00> : vector<5x256xf32>
    %9 = tpu.matmul %7, %8, %cst_12 {dimension_numbers = #tpu.dot_dimension_numbers<[1], [0], [0], [1], [0, 0, 1, 1], [], []>} : vector<5x64xf32>, vector<64x256xf32>, vector<5x256xf32> -> vector<5x256xf32>
    %10 = arith.addf %3, %9 : vector<5x256xf32>
    %c0_13 = arith.constant 0 : index
    %c0_14 = arith.constant 0 : index
    %11 = vector.load %arg7[%c0_13, %c0_14] : memref<5x16xf32, #tpu.memory_space<vmem>>, vector<5x16xf32>
    %c0_15 = arith.constant 0 : index
    %c0_16 = arith.constant 0 : index
    %c0_17 = arith.constant 0 : index
    %12 = vector.load %arg3[%c0_15, %c0_16, %c0_17] : memref<1x16x16xf32, #tpu.memory_space<vmem>>, vector<1x16x16xf32>
    %13 = vector.shape_cast %12 : vector<1x16x16xf32> to vector<16x16xf32>
    %cst_18 = arith.constant dense<0.000000e+00> : vector<5x16xf32>
    %14 = tpu.matmul %11, %13, %cst_18 {dimension_numbers = #tpu.dot_dimension_numbers<[1], [0], [0], [1], [0, 0, 1, 1], [], []>} : vector<5x16xf32>, vector<16x16xf32>, vector<5x16xf32> -> vector<5x16xf32>
    %c0_19 = arith.constant 0 : index
    %c0_20 = arith.constant 0 : index
    %15 = vector.load %arg10[%c0_19, %c0_20] : memref<16x256xf32, #tpu.memory_space<vmem>>, vector<16x256xf32>
    %cst_21 = arith.constant dense<0.000000e+00> : vector<5x256xf32>
    %16 = tpu.matmul %14, %15, %cst_21 {dimension_numbers = #tpu.dot_dimension_numbers<[1], [0], [0], [1], [0, 0, 1, 1], [], []>} : vector<5x16xf32>, vector<16x256xf32>, vector<5x256xf32> -> vector<5x256xf32>
    %17 = arith.addf %10, %16 : vector<5x256xf32>
    %c0_22 = arith.constant 0 : index
    %c0_23 = arith.constant 0 : index
    %18 = vector.load %arg8[%c0_22, %c0_23] : memref<5x32xf32, #tpu.memory_space<vmem>>, vector<5x32xf32>
    %c0_24 = arith.constant 0 : index
    %c0_25 = arith.constant 0 : index
    %c0_26 = arith.constant 0 : index
    %19 = vector.load %arg4[%c0_24, %c0_25, %c0_26] : memref<1x32x4xf32, #tpu.memory_space<vmem>>, vector<1x32x4xf32>
    %20 = vector.shape_cast %19 : vector<1x32x4xf32> to vector<32x4xf32>
    %cst_27 = arith.constant dense<0.000000e+00> : vector<5x4xf32>
    %21 = tpu.matmul %18, %20, %cst_27 {dimension_numbers = #tpu.dot_dimension_numbers<[1], [0], [0], [1], [0, 0, 1, 1], [], []>} : vector<5x32xf32>, vector<32x4xf32>, vector<5x4xf32> -> vector<5x4xf32>
    %c0_28 = arith.constant 0 : index
    %c0_29 = arith.constant 0 : index
    %22 = vector.load %arg11[%c0_28, %c0_29] : memref<4x256xf32, #tpu.memory_space<vmem>>, vector<4x256xf32>
    %cst_30 = arith.constant dense<0.000000e+00> : vector<5x256xf32>
    %23 = tpu.matmul %21, %22, %cst_30 {dimension_numbers = #tpu.dot_dimension_numbers<[1], [0], [0], [1], [0, 0, 1, 1], [], []>} : vector<5x4xf32>, vector<4x256xf32>, vector<5x256xf32> -> vector<5x256xf32>
    %24 = arith.addf %17, %23 : vector<5x256xf32>
    %c0_31 = arith.constant 0 : index
    %c0_32 = arith.constant 0 : index
    %25 = vector.load %arg12[%c0_31, %c0_32] : memref<256x256xf32, #tpu.memory_space<vmem>>, vector<256x256xf32>
    %cst_33 = arith.constant dense<0.000000e+00> : vector<5x256xf32>
    %26 = tpu.matmul %24, %25, %cst_33 {dimension_numbers = #tpu.dot_dimension_numbers<[1], [0], [0], [1], [0, 0, 1, 1], [], []>} : vector<5x256xf32>, vector<256x256xf32>, vector<5x256xf32> -> vector<5x256xf32>
    %c0_34 = arith.constant 0 : index
    %c0_35 = arith.constant 0 : index
    %27 = vector.load %arg13[%c0_34, %c0_35] : memref<5x1xf32, #tpu.memory_space<vmem>>, vector<5x1xf32>
    %28 = vector.broadcast %27 : vector<5x1xf32> to vector<5x256xf32>
    %29 = arith.addf %26, %28 : vector<5x256xf32>
    %c0_36 = arith.constant 0 : index
    %c0_37 = arith.constant 0 : index
    %c0_38 = arith.constant 0 : index
    %30 = vector.load %arg14[%c0_36, %c0_37, %c0_38] : memref<1x5x256xf32, #tpu.memory_space<vmem>>, vector<1x5x256xf32>
    %31 = vector.shape_cast %30 : vector<1x5x256xf32> to vector<5x256xf32>
    %32 = vector.shape_cast %29 : vector<5x256xf32> to vector<1x5x256xf32>
    tpu.vector_store %arg14[%c0_36, %c0_37, %c0_38], %32 {strides = array<i32>} : memref<1x5x256xf32, #tpu.memory_space<vmem>>, vector<1x5x256xf32>,
    return
  }
  func.func @transform_0(%arg0: i32) -> (i32, i32, i32) {
    %c0_i32 = arith.constant 0 : i32
    %c0_i32_0 = arith.constant 0 : i32
    %c0_i32_1 = arith.constant 0 : i32
    return %arg0, %c0_i32, %c0_i32_0 : i32, i32, i32
  }
  func.func @transform_1(%arg0: i32) -> (i32, i32, i32) {
    %c0_i32 = arith.constant 0 : i32
    %c0_i32_0 = arith.constant 0 : i32
    %c0_i32_1 = arith.constant 0 : i32
    return %arg0, %c0_i32, %c0_i32_0 : i32, i32, i32
  }
  func.func @transform_2(%arg0: i32) -> (i32, i32, i32) {
    %c0_i32 = arith.constant 0 : i32
    %c0_i32_0 = arith.constant 0 : i32
    %c0_i32_1 = arith.constant 0 : i32
    return %arg0, %c0_i32, %c0_i32_0 : i32, i32, i32
  }
  func.func @transform_3(%arg0: i32) -> (i32, i32, i32) {
    %c0_i32 = arith.constant 0 : i32
    %c0_i32_0 = arith.constant 0 : i32
    %c0_i32_1 = arith.constant 0 : i32
    return %arg0, %c0_i32, %c0_i32_0 : i32, i32, i32
  }
  func.func @transform_4(%arg0: i32) -> (i32, i32) {
    %c0_i32 = arith.constant 0 : i32
    %c0_i32_0 = arith.constant 0 : i32
    %c0_i32_1 = arith.constant 0 : i32
    return %c0_i32, %c0_i32_0 : i32, i32
  }
  func.func @transform_5(%arg0: i32) -> (i32, i32) {
    %c0_i32 = arith.constant 0 : i32
    %c0_i32_0 = arith.constant 0 : i32
    %c0_i32_1 = arith.constant 0 : i32
    return %c0_i32, %c0_i32_0 : i32, i32
  }
  func.func @transform_6(%arg0: i32) -> (i32, i32) {
    %c0_i32 = arith.constant 0 : i32
    %c0_i32_0 = arith.constant 0 : i32
    %c0_i32_1 = arith.constant 0 : i32
    return %c0_i32, %c0_i32_0 : i32, i32
  }
  func.func @transform_7(%arg0: i32) -> (i32, i32) {
    %c0_i32 = arith.constant 0 : i32
    %c0_i32_0 = arith.constant 0 : i32
    %c0_i32_1 = arith.constant 0 : i32
    return %c0_i32, %c0_i32_0 : i32, i32
  }
  func.func @transform_8(%arg0: i32) -> (i32, i32) {
    %c0_i32 = arith.constant 0 : i32
    %c0_i32_0 = arith.constant 0 : i32
    %c0_i32_1 = arith.constant 0 : i32
    return %c0_i32, %c0_i32_0 : i32, i32
  }
  func.func @transform_9(%arg0: i32) -> (i32, i32) {
    %c0_i32 = arith.constant 0 : i32
    %c0_i32_0 = arith.constant 0 : i32
    %c0_i32_1 = arith.constant 0 : i32
    return %c0_i32, %c0_i32_0 : i32, i32
  }
  func.func @transform_10(%arg0: i32) -> (i32, i32) {
    %c0_i32 = arith.constant 0 : i32
    %c0_i32_0 = arith.constant 0 : i32
    %c0_i32_1 = arith.constant 0 : i32
    return %c0_i32, %c0_i32_0 : i32, i32
  }
  func.func @transform_11(%arg0: i32) -> (i32, i32) {
    %c0_i32 = arith.constant 0 : i32
    %c0_i32_0 = arith.constant 0 : i32
    %c0_i32_1 = arith.constant 0 : i32
    return %c0_i32, %c0_i32_0 : i32, i32
  }
  func.func @transform_12(%arg0: i32) -> (i32, i32) {
    %c0_i32 = arith.constant 0 : i32
    %c0_i32_0 = arith.constant 0 : i32
    %c0_i32_1 = arith.constant 0 : i32
    return %c0_i32, %c0_i32_0 : i32, i32
  }
  func.func @transform_13(%arg0: i32) -> (i32, i32, i32) {
    %c0_i32 = arith.constant 0 : i32
    %c0_i32_0 = arith.constant 0 : i32
    %c0_i32_1 = arith.constant 0 : i32
    return %arg0, %c0_i32, %c0_i32_0 : i32, i32, i32
  }
}

</mosaic_0001>

<llo_original>
// kernel: tpu_custom_call.1
$region0: #{tpu_custom_call.1}
  #allocation0 [shape = 'u32[]', space=smem, size = 0x4, offset = 0x4, fixed_abs, tag = 'smem constant byte address 0x4 - core index']
  #allocation1 [shape = 'u32[72,128]{1,0:T(1,128)}', space=vmem, size = 0x9000, scoped, tag = 'internal scratch']
  %s0 = inlined_call_operand.vmem [shape: f32[2,4,256], index: 0, kind: input, shape index: {}]
  %s1 = inlined_call_operand.hbm [shape: f32[2,8,64], index: 1, kind: input, shape index: {}]
  %s2 = inlined_call_operand.vmem [shape: f32[2,16,16], index: 2, kind: input, shape index: {}]
  %s3 = inlined_call_operand.vmem [shape: f32[2,32,4], index: 3, kind: input, shape index: {}]
  %s4 = inlined_call_operand.vmem [shape: f32[5,4], index: 4, kind: input, shape index: {}]
  %s5 = inlined_call_operand.vmem [shape: f32[5,8], index: 5, kind: input, shape index: {}]
  %s6 = inlined_call_operand.hbm [shape: f32[5,16], index: 6, kind: input, shape index: {}]
  %s7 = inlined_call_operand.hbm [shape: f32[5,32], index: 7, kind: input, shape index: {}]
  %s8 = inlined_call_operand.hbm [shape: f32[64,256], index: 8, kind: input, shape index: {}]
  %s9 = inlined_call_operand.vmem [shape: f32[16,256], index: 9, kind: input, shape index: {}]
  %s10 = inlined_call_operand.hbm [shape: f32[4,256], index: 10, kind: input, shape index: {}]
  %s11 = inlined_call_operand.hbm [shape: f32[256,256], index: 11, kind: input, shape index: {}]
  %s12 = inlined_call_operand.vmem [shape: f32[5,1], index: 12, kind: input, shape index: {}]
  %s13 = inlined_call_operand.vmem [shape: f32[2,5,256], index: 13, kind: output, shape index: {}]
  %s14 = sld [smem:[#allocation0]]
  $region109: #{tpu_custom_call.1} parent=0
    _
  %s16 = ssub.s32 1, %s14
  %s17 = scalar_select 0, %s16, %s14
  $region1: #{tpu_custom_call.1} parent=0
    #allocation2 [shape = 'u8[8192]{0}', space=vmem, size = 0x2000, scoped, tag = 'input window, operand 1']
    #allocation3 [shape = 's32[2]{0}', space=sflag, size = 0x8, scoped, tag = 'scoped memory for tpu_custom_call.1']
    #allocation4 [shape = 'u8[4096]{0}', space=vmem, size = 0x1000, scoped, tag = 'input window, operand 6, single buffered']
    #allocation5 [shape = 's32[1]{0}', space=sflag, size = 0x4, scoped, tag = 'scoped memory for tpu_custom_call.1']
    #allocation6 [shape = 'u8[4096]{0}', space=vmem, size = 0x1000, scoped, tag = 'input window, operand 7, single buffered']
    #allocation7 [shape = 'u8[65536]{0}', space=vmem, size = 0x10000, scoped, tag = 'input window, operand 8, single buffered']
    #allocation8 [shape = 's32[1]{0}', space=sflag, size = 0x4, scoped, tag = 'scoped memory for tpu_custom_call.1']
    #allocation9 [shape = 'u8[4096]{0}', space=vmem, size = 0x1000, scoped, tag = 'input window, operand 10, single buffered']
    #allocation10 [shape = 'u8[262144]{0}', space=vmem, size = 0x40000, scoped, tag = 'input window, operand 11, single buffered']
    #allocation11 [shape = 's32[1]{0}', space=sflag, size = 0x4, scoped, tag = 'scoped memory for tpu_custom_call.1']
    %18 = vsyncpa [#allocation3], 0
    %s19 = scalar_lea.sflag [#allocation3], 1
    %20 = vsyncpa %s19, 0
    %21 = vsyncpa [#allocation5], 0
    %22 = vsyncpa [#allocation8], 0
    %23 = vsyncpa [#allocation11], 0
    loop: start=0, step=1, limit=4
    $region2: #{tpu_custom_call.1} parent=1 // loop_pre_header
      _
    $region3: #{tpu_custom_call.1} parent=1 // loop_header
      %s25 = sphi 0, %s29
      %p26 = scmp.ge.s32.totalorder %s25, 4
      %s35 = sphi 0, %s37
      %s38 = sphi 0, %s35
      %s39 = sphi 0, %s38
      %s55 = sphi 0, %s39
      %s61 = sphi 0, %s63
      %s64 = sphi 0, %s61
      %s65 = sphi 0, %s64
      %s81 = sphi 0, %s65
      %s87 = sphi 0, %s89
      %s90 = sphi 0, %s87
      %s91 = sphi 0, %s90
      %s107 = sphi 0, %s91
      %s113 = sphi 0, %s115
      %s116 = sphi 0, %s113
      %s117 = sphi 0, %s116
      %s133 = sphi 0, %s117
      %s137 = sphi 0, %s137
      %s139 = sphi 0, %s137
      %s140 = sphi 0, %s139
      %s154 = sphi 0, %s140
      %s158 = sphi 0, %s158
      %s160 = sphi 0, %s158
      %s161 = sphi 0, %s160
      %s175 = sphi 0, %s161
      %s179 = sphi 0, %s179
      %s181 = sphi 0, %s179
      %s182 = sphi 0, %s181
      %s196 = sphi 0, %s182
      %s200 = sphi 0, %s200
      %s202 = sphi 0, %s200
      %s203 = sphi 0, %s202
      %s217 = sphi 0, %s203
      %s221 = sphi 0, %s221
      %s223 = sphi 0, %s221
      %s224 = sphi 0, %s223
      %s238 = sphi 0, %s224
      %s242 = sphi 0, %s242
      %s244 = sphi 0, %s242
      %s245 = sphi 0, %s244
      %s259 = sphi 0, %s245
      %s263 = sphi 0, %s263
      %s265 = sphi 0, %s263
      %s266 = sphi 0, %s265
      %s280 = sphi 0, %s266
      %s284 = sphi 0, %s284
      %s286 = sphi 0, %s284
      %s287 = sphi 0, %s286
      %s301 = sphi 0, %s287
      %s305 = sphi 0, %s305
      %s307 = sphi 0, %s305
      %s308 = sphi 0, %s307
      %s322 = sphi 0, %s308
      %s328 = sphi 0, %s330
      %s331 = sphi 0, %s328
      %s332 = sphi 0, %s331
      %s348 = sphi 0, %s332
    $region4: #{tpu_custom_call.1} parent=1 // loop_header_branch
      %28 = sbr.rel (%p26) target = $region8
    $region5: #{tpu_custom_call.1} parent=1 // loop_body
      %s30 = ssub.s32 %s25, 1
      %s31 = ssub.s32 %s25, 2
      %s32 = sadd.s32 %s25, 1
      %s33 = ssub.s32 %s25, %s32
      %p34 = scmp.eq.s32.totalorder %s33, 0
      %s36 = sadd.s32 %s35, 1
      %s37 = scalar_select %p34, %s35, %s36
      %p40 = pneg %p34
      %p41 = scmp.eq.s32.totalorder %s25, 1
      %p42 = por %p40, %p41
      %p43 = scmp.ne.s32.totalorder %s35, %s38
      %p44 = scmp.eq.s32.totalorder %s25, 0
      %p45 = por %p43, %p44
      %p46 = scmp.ne.s32.totalorder %s35, %s38
      %p47 = scmp.eq.s32.totalorder %s30, 1
      %p48 = por %p46, %p47
      %p49 = scmp.ne.s32.totalorder %s38, %s39
      %p50 = scmp.eq.s32.totalorder %s30, 0
      %p51 = por %p49, %p50
      %p52 = scmp.ne.s32.totalorder %s38, %s39
      %p53 = scmp.eq.s32.totalorder %s31, 1
      %p54 = por %p52, %p53
      %p56 = scmp.ne.s32.totalorder %s39, %s55
      %p57 = scmp.eq.s32.totalorder %s31, 0
      %p58 = por %p56, %p57
      %s59 = ssub.s32 %s25, %s32
      %p60 = scmp.eq.s32.totalorder %s59, 0
      %s62 = sadd.s32 %s61, 1
      %s63 = scalar_select %p60, %s61, %s62
      %p66 = pneg %p60
      %p67 = scmp.eq.s32.totalorder %s25, 1
      %p68 = por %p66, %p67
      %p69 = scmp.ne.s32.totalorder %s61, %s64
      %p70 = scmp.eq.s32.totalorder %s25, 0
      %p71 = por %p69, %p70
      %p72 = scmp.ne.s32.totalorder %s61, %s64
      %p73 = scmp.eq.s32.totalorder %s30, 1
      %p74 = por %p72, %p73
      %p75 = scmp.ne.s32.totalorder %s64, %s65
      %p76 = scmp.eq.s32.totalorder %s30, 0
      %p77 = por %p75, %p76
      %p78 = scmp.ne.s32.totalorder %s64, %s65
      %p79 = scmp.eq.s32.totalorder %s31, 1
      %p80 = por %p78, %p79
      %p82 = scmp.ne.s32.totalorder %s65, %s81
      %p83 = scmp.eq.s32.totalorder %s31, 0
      %p84 = por %p82, %p83
      %s85 = ssub.s32 %s25, %s32
      %p86 = scmp.eq.s32.totalorder %s85, 0
      %s88 = sadd.s32 %s87, 1
      %s89 = scalar_select %p86, %s87, %s88
      %p92 = pneg %p86
      %p93 = scmp.eq.s32.totalorder %s25, 1
      %p94 = por %p92, %p93
      %p95 = scmp.ne.s32.totalorder %s87, %s90
      %p96 = scmp.eq.s32.totalorder %s25, 0
      %p97 = por %p95, %p96
      %p98 = scmp.ne.s32.totalorder %s87, %s90
      %p99 = scmp.eq.s32.totalorder %s30, 1
      %p100 = por %p98, %p99
      %p101 = scmp.ne.s32.totalorder %s90, %s91
      %p102 = scmp.eq.s32.totalorder %s30, 0
      %p103 = por %p101, %p102
      %p104 = scmp.ne.s32.totalorder %s90, %s91
      %p105 = scmp.eq.s32.totalorder %s31, 1
      %p106 = por %p104, %p105
      %p108 = scmp.ne.s32.totalorder %s91, %s107
      %p109 = scmp.eq.s32.totalorder %s31, 0
      %p110 = por %p108, %p109
      %s111 = ssub.s32 %s25, %s32
      %p112 = scmp.eq.s32.totalorder %s111, 0
      %s114 = sadd.s32 %s113, 1
      %s115 = scalar_select %p112, %s113, %s114
      %p118 = pneg %p112
      %p119 = scmp.eq.s32.totalorder %s25, 1
      %p120 = por %p118, %p119
      %p121 = scmp.ne.s32.totalorder %s113, %s116
      %p122 = scmp.eq.s32.totalorder %s25, 0
      %p123 = por %p121, %p122
      %p124 = scmp.ne.s32.totalorder %s113, %s116
      %p125 = scmp.eq.s32.totalorder %s30, 1
      %p126 = por %p124, %p125
      %p127 = scmp.ne.s32.totalorder %s116, %s117
      %p128 = scmp.eq.s32.totalorder %s30, 0
      %p129 = por %p127, %p128
      %p130 = scmp.ne.s32.totalorder %s116, %s117
      %p131 = scmp.eq.s32.totalorder %s31, 1
      %p132 = por %p130, %p131
      %p134 = scmp.ne.s32.totalorder %s117, %s133
      %p135 = scmp.eq.s32.totalorder %s31, 0
      %p136 = por %p134, %p135
      %s138 = sadd.s32 %s137, 1
      %p141 = scmp.eq.s32.totalorder %s25, 1
      %p142 = scmp.ne.s32.totalorder %s137, %s139
      %p143 = scmp.eq.s32.totalorder %s25, 0
      %p144 = por %p142, %p143
      %p145 = scmp.ne.s32.totalorder %s137, %s139
      %p146 = scmp.eq.s32.totalorder %s30, 1
      %p147 = por %p145, %p146
      %p148 = scmp.ne.s32.totalorder %s139, %s140
      %p149 = scmp.eq.s32.totalorder %s30, 0
      %p150 = por %p148, %p149
      %p151 = scmp.ne.s32.totalorder %s139, %s140
      %p152 = scmp.eq.s32.totalorder %s31, 1
      %p153 = por %p151, %p152
      %p155 = scmp.ne.s32.totalorder %s140, %s154
      %p156 = scmp.eq.s32.totalorder %s31, 0
      %p157 = por %p155, %p156
      %s159 = sadd.s32 %s158, 1
      %p162 = scmp.eq.s32.totalorder %s25, 1
      %p163 = scmp.ne.s32.totalorder %s158, %s160
      %p164 = scmp.eq.s32.totalorder %s25, 0
      %p165 = por %p163, %p164
      %p166 = scmp.ne.s32.totalorder %s158, %s160
      %p167 = scmp.eq.s32.totalorder %s30, 1
      %p168 = por %p166, %p167
      %p169 = scmp.ne.s32.totalorder %s160, %s161
      %p170 = scmp.eq.s32.totalorder %s30, 0
      %p171 = por %p169, %p170
      %p172 = scmp.ne.s32.totalorder %s160, %s161
      %p173 = scmp.eq.s32.totalorder %s31, 1
      %p174 = por %p172, %p173
      %p176 = scmp.ne.s32.totalorder %s161, %s175
      %p177 = scmp.eq.s32.totalorder %s31, 0
      %p178 = por %p176, %p177
      %s180 = sadd.s32 %s179, 1
      %p183 = scmp.eq.s32.totalorder %s25, 1
      %p184 = scmp.ne.s32.totalorder %s179, %s181
      %p185 = scmp.eq.s32.totalorder %s25, 0
      %p186 = por %p184, %p185
      %p187 = scmp.ne.s32.totalorder %s179, %s181
      %p188 = scmp.eq.s32.totalorder %s30, 1
      %p189 = por %p187, %p188
      %p190 = scmp.ne.s32.totalorder %s181, %s182
      %p191 = scmp.eq.s32.totalorder %s30, 0
      %p192 = por %p190, %p191
      %p193 = scmp.ne.s32.totalorder %s181, %s182
      %p194 = scmp.eq.s32.totalorder %s31, 1
      %p195 = por %p193, %p194
      %p197 = scmp.ne.s32.totalorder %s182, %s196
      %p198 = scmp.eq.s32.totalorder %s31, 0
      %p199 = por %p197, %p198
      %s201 = sadd.s32 %s200, 1
      %p204 = scmp.eq.s32.totalorder %s25, 1
      %p205 = scmp.ne.s32.totalorder %s200, %s202
      %p206 = scmp.eq.s32.totalorder %s25, 0
      %p207 = por %p205, %p206
      %p208 = scmp.ne.s32.totalorder %s200, %s202
      %p209 = scmp.eq.s32.totalorder %s30, 1
      %p210 = por %p208, %p209
      %p211 = scmp.ne.s32.totalorder %s202, %s203
      %p212 = scmp.eq.s32.totalorder %s30, 0
      %p213 = por %p211, %p212
      %p214 = scmp.ne.s32.totalorder %s202, %s203
      %p215 = scmp.eq.s32.totalorder %s31, 1
      %p216 = por %p214, %p215
      %p218 = scmp.ne.s32.totalorder %s203, %s217
      %p219 = scmp.eq.s32.totalorder %s31, 0
      %p220 = por %p218, %p219
      %s222 = sadd.s32 %s221, 1
      %p225 = scmp.eq.s32.totalorder %s25, 1
      %p226 = scmp.ne.s32.totalorder %s221, %s223
      %p227 = scmp.eq.s32.totalorder %s25, 0
      %p228 = por %p226, %p227
      %p229 = scmp.ne.s32.totalorder %s221, %s223
      %p230 = scmp.eq.s32.totalorder %s30, 1
      %p231 = por %p229, %p230
      %p232 = scmp.ne.s32.totalorder %s223, %s224
      %p233 = scmp.eq.s32.totalorder %s30, 0
      %p234 = por %p232, %p233
      %p235 = scmp.ne.s32.totalorder %s223, %s224
      %p236 = scmp.eq.s32.totalorder %s31, 1
      %p237 = por %p235, %p236
      %p239 = scmp.ne.s32.totalorder %s224, %s238
      %p240 = scmp.eq.s32.totalorder %s31, 0
      %p241 = por %p239, %p240
      %s243 = sadd.s32 %s242, 1
      %p246 = scmp.eq.s32.totalorder %s25, 1
      %p247 = scmp.ne.s32.totalorder %s242, %s244
      %p248 = scmp.eq.s32.totalorder %s25, 0
      %p249 = por %p247, %p248
      %p250 = scmp.ne.s32.totalorder %s242, %s244
      %p251 = scmp.eq.s32.totalorder %s30, 1
      %p252 = por %p250, %p251
      %p253 = scmp.ne.s32.totalorder %s244, %s245
      %p254 = scmp.eq.s32.totalorder %s30, 0
      %p255 = por %p253, %p254
      %p256 = scmp.ne.s32.totalorder %s244, %s245
      %p257 = scmp.eq.s32.totalorder %s31, 1
      %p258 = por %p256, %p257
      %p260 = scmp.ne.s32.totalorder %s245, %s259
      %p261 = scmp.eq.s32.totalorder %s31, 0
      %p262 = por %p260, %p261
      %s264 = sadd.s32 %s263, 1
      %p267 = scmp.eq.s32.totalorder %s25, 1
      %p268 = scmp.ne.s32.totalorder %s263, %s265
      %p269 = scmp.eq.s32.totalorder %s25, 0
      %p270 = por %p268, %p269
      %p271 = scmp.ne.s32.totalorder %s263, %s265
      %p272 = scmp.eq.s32.totalorder %s30, 1
      %p273 = por %p271, %p272
      %p274 = scmp.ne.s32.totalorder %s265, %s266
      %p275 = scmp.eq.s32.totalorder %s30, 0
      %p276 = por %p274, %p275
      %p277 = scmp.ne.s32.totalorder %s265, %s266
      %p278 = scmp.eq.s32.totalorder %s31, 1
      %p279 = por %p277, %p278
      %p281 = scmp.ne.s32.totalorder %s266, %s280
      %p282 = scmp.eq.s32.totalorder %s31, 0
      %p283 = por %p281, %p282
      %s285 = sadd.s32 %s284, 1
      %p288 = scmp.eq.s32.totalorder %s25, 1
      %p289 = scmp.ne.s32.totalorder %s284, %s286
      %p290 = scmp.eq.s32.totalorder %s25, 0
      %p291 = por %p289, %p290
      %p292 = scmp.ne.s32.totalorder %s284, %s286
      %p293 = scmp.eq.s32.totalorder %s30, 1
      %p294 = por %p292, %p293
      %p295 = scmp.ne.s32.totalorder %s286, %s287
      %p296 = scmp.eq.s32.totalorder %s30, 0
      %p297 = por %p295, %p296
      %p298 = scmp.ne.s32.totalorder %s286, %s287
      %p299 = scmp.eq.s32.totalorder %s31, 1
      %p300 = por %p298, %p299
      %p302 = scmp.ne.s32.totalorder %s287, %s301
      %p303 = scmp.eq.s32.totalorder %s31, 0
      %p304 = por %p302, %p303
      %s306 = sadd.s32 %s305, 1
      %p309 = scmp.eq.s32.totalorder %s25, 1
      %p310 = scmp.ne.s32.totalorder %s305, %s307
      %p311 = scmp.eq.s32.totalorder %s25, 0
      %p312 = por %p310, %p311
      %p313 = scmp.ne.s32.totalorder %s305, %s307
      %p314 = scmp.eq.s32.totalorder %s30, 1
      %p315 = por %p313, %p314
      %p316 = scmp.ne.s32.totalorder %s307, %s308
      %p317 = scmp.eq.s32.totalorder %s30, 0
      %p318 = por %p316, %p317
      %p319 = scmp.ne.s32.totalorder %s307, %s308
      %p320 = scmp.eq.s32.totalorder %s31, 1
      %p321 = por %p319, %p320
      %p323 = scmp.ne.s32.totalorder %s308, %s322
      %p324 = scmp.eq.s32.totalorder %s31, 0
      %p325 = por %p323, %p324
      %s326 = ssub.s32 %s25, %s32
      %p327 = scmp.eq.s32.totalorder %s326, 0
      %s329 = sadd.s32 %s328, 1
      %s330 = scalar_select %p327, %s328, %s329
      %p333 = pneg %p327
      %p334 = scmp.eq.s32.totalorder %s25, 1
      %p335 = por %p333, %p334
      %p336 = scmp.ne.s32.totalorder %s328, %s331
      %p337 = scmp.eq.s32.totalorder %s25, 0
      %p338 = por %p336, %p337
      %p339 = scmp.ne.s32.totalorder %s328, %s331
      %p340 = scmp.eq.s32.totalorder %s30, 1
      %p341 = por %p339, %p340
      %p342 = scmp.ne.s32.totalorder %s331, %s332
      %p343 = scmp.eq.s32.totalorder %s30, 0
      %p344 = por %p342, %p343
      %p345 = scmp.ne.s32.totalorder %s331, %s332
      %p346 = scmp.eq.s32.totalorder %s31, 1
      %p347 = por %p345, %p346
      %p349 = scmp.ne.s32.totalorder %s332, %s348
      %p350 = scmp.eq.s32.totalorder %s31, 0
      %p351 = por %p349, %p350
      %p352 = scmp.le.s32.totalorder 1, %s25
      %p353 = scmp.lt.s32.totalorder %s25, 3
      %p354 = pnand %p352, %p353
      %p355 = pneg %p354
      // Predicated region
      $region9: #{tpu_custom_call.1} parent=5 // pred_check
        _
      $region10: #{tpu_custom_call.1} parent=5 // pred_check_branch
        %357 = sbr.rel (%p354) target = $region12
      $region11: #{tpu_custom_call.1} parent=5 // pred_region
        %s358 = ssub.s32 %s25, 1
        // Predicated region
        $region13: #{tpu_custom_call.1} parent=11 // pred_check
          %p359 = pneg %p150
        $region14: #{tpu_custom_call.1} parent=11 // pred_check_branch
          %361 = sbr.rel (%p359) target = $region16
        $region15: #{tpu_custom_call.1} parent=11 // pred_region
          _
        $region16: #{tpu_custom_call.1} parent=11 // pred_fallthru
          _
        // Predicated region
        $region17: #{tpu_custom_call.1} parent=11 // pred_check
          %p362 = pneg %p171
        $region18: #{tpu_custom_call.1} parent=11 // pred_check_branch
          %364 = sbr.rel (%p362) target = $region20
        $region19: #{tpu_custom_call.1} parent=11 // pred_region
          _
        $region20: #{tpu_custom_call.1} parent=11 // pred_fallthru
          _
        // Predicated region
        $region21: #{tpu_custom_call.1} parent=11 // pred_check
          %p365 = pneg %p192
        $region22: #{tpu_custom_call.1} parent=11 // pred_check_branch
          %367 = sbr.rel (%p365) target = $region24
        $region23: #{tpu_custom_call.1} parent=11 // pred_region
          %369 = vsyncadd [#allocation5], 0
          %s371 = sshll.u32 %s6, 4
          %s372 = int_to_ptr.hbm [resolvable:$true] %s371
          %s373 = sshll.u32 [#allocation4], 4
          %s374 = int_to_ptr.vmem [resolvable:$true] %s373
          %376 = dma.hbm_to_vmem [thread:$0]  %s372, 128, %s374, [#allocation5]
        $region24: #{tpu_custom_call.1} parent=11 // pred_fallthru
          _
        // Predicated region
        $region25: #{tpu_custom_call.1} parent=11 // pred_check
          %p377 = pneg %p213
        $region26: #{tpu_custom_call.1} parent=11 // pred_check_branch
          %379 = sbr.rel (%p377) target = $region28
        $region27: #{tpu_custom_call.1} parent=11 // pred_region
          %381 = vsyncadd [#allocation5], 0
          %s383 = sshll.u32 %s7, 4
          %s384 = int_to_ptr.hbm [resolvable:$true] %s383
          %s385 = sshll.u32 [#allocation6], 4
          %s386 = int_to_ptr.vmem [resolvable:$true] %s385
          %388 = dma.hbm_to_vmem [thread:$0]  %s384, 128, %s386, [#allocation5]
        $region28: #{tpu_custom_call.1} parent=11 // pred_fallthru
          _
        // Predicated region
        $region29: #{tpu_custom_call.1} parent=11 // pred_check
          %p389 = pneg %p234
        $region30: #{tpu_custom_call.1} parent=11 // pred_check_branch
          %391 = sbr.rel (%p389) target = $region32
        $region31: #{tpu_custom_call.1} parent=11 // pred_region
          %393 = vsyncadd [#allocation8], 0
          %s394 = sshll.u32 %s8, 4
          %s395 = int_to_ptr.hbm [resolvable:$true] %s394
          %s396 = sshll.u32 [#allocation7], 4
          %s397 = int_to_ptr.vmem [resolvable:$true] %s396
          %402 = dma.hbm_to_vmem [thread:$0]  %s395, 2048, %s397, [#allocation8], 256, 256, 16
        $region32: #{tpu_custom_call.1} parent=11 // pred_fallthru
          _
        // Predicated region
        $region33: #{tpu_custom_call.1} parent=11 // pred_check
          %p403 = pneg %p255
        $region34: #{tpu_custom_call.1} parent=11 // pred_check_branch
          %405 = sbr.rel (%p403) target = $region36
        $region35: #{tpu_custom_call.1} parent=11 // pred_region
          _
        $region36: #{tpu_custom_call.1} parent=11 // pred_fallthru
          _
        // Predicated region
        $region37: #{tpu_custom_call.1} parent=11 // pred_check
          %p406 = pneg %p276
        $region38: #{tpu_custom_call.1} parent=11 // pred_check_branch
          %408 = sbr.rel (%p406) target = $region40
        $region39: #{tpu_custom_call.1} parent=11 // pred_region
          %410 = vsyncadd [#allocation8], 0
          %s412 = sshll.u32 %s10, 4
          %s413 = int_to_ptr.hbm [resolvable:$true] %s412
          %s414 = sshll.u32 [#allocation9], 4
          %s415 = int_to_ptr.vmem [resolvable:$true] %s414
          %417 = dma.hbm_to_vmem [thread:$0]  %s413, 128, %s415, [#allocation8]
        $region40: #{tpu_custom_call.1} parent=11 // pred_fallthru
          _
        // Predicated region
        $region41: #{tpu_custom_call.1} parent=11 // pred_check
          %p418 = pneg %p297
        $region42: #{tpu_custom_call.1} parent=11 // pred_check_branch
          %420 = sbr.rel (%p418) target = $region44
        $region43: #{tpu_custom_call.1} parent=11 // pred_region
          %422 = vsyncadd [#allocation11], 0
          %s423 = sshll.u32 %s11, 4
          %s424 = int_to_ptr.hbm [resolvable:$true] %s423
          %s425 = sshll.u32 [#allocation10], 4
          %s426 = int_to_ptr.vmem [resolvable:$true] %s425
          %431 = dma.hbm_to_vmem [thread:$0]  %s424, 8192, %s426, [#allocation11], 256, 256, 16
        $region44: #{tpu_custom_call.1} parent=11 // pred_fallthru
          _
        // Predicated region
        $region45: #{tpu_custom_call.1} parent=11 // pred_check
          %p432 = pneg %p318
        $region46: #{tpu_custom_call.1} parent=11 // pred_check_branch
          %434 = sbr.rel (%p432) target = $region48
        $region47: #{tpu_custom_call.1} parent=11 // pred_region
          _
        $region48: #{tpu_custom_call.1} parent=11 // pred_fallthru
          _
      $region12: #{tpu_custom_call.1} parent=5 // pred_fallthru
        _
      %p435 = scmp.lt.s32.totalorder %s25, 2
      // Predicated region
      $region49: #{tpu_custom_call.1} parent=5 // pred_check
        %p436 = pneg %p435
      $region50: #{tpu_custom_call.1} parent=5 // pred_check_branch
        %438 = sbr.rel (%p436) target = $region52
      $region51: #{tpu_custom_call.1} parent=5 // pred_region
        // Predicated region
        $region53: #{tpu_custom_call.1} parent=51 // pred_check
          %p439 = pneg %p45
        $region54: #{tpu_custom_call.1} parent=51 // pred_check_branch
          %441 = sbr.rel (%p439) target = $region56
        $region55: #{tpu_custom_call.1} parent=51 // pred_region
          %p442 = scmp.lt.s32.totalorder %s25, 1
          %s443 = scalar_select %p442, %s25, 1
          %s444 = smul.addr %s443, 2
          %s445 = smul.addr %s444, 4
          %s446 = scalar_lea.vmem %s0, %s445
        $region56: #{tpu_custom_call.1} parent=51 // pred_fallthru
          _
        // Predicated region
        $region57: #{tpu_custom_call.1} parent=51 // pred_check
          %p447 = pneg %p71
        $region58: #{tpu_custom_call.1} parent=51 // pred_check_branch
          %449 = sbr.rel (%p447) target = $region60
        $region59: #{tpu_custom_call.1} parent=51 // pred_region
          %s450 = sand.u32 %s61, 1
          %s451 = scalar_lea.sflag [#allocation3], %s450
          %s452 = sand.u32 %s61, 1
          %s453 = smul.addr %s452, 8
          %s454 = scalar_lea.vmem [#allocation2], %s453
          %456 = vsyncadd %s451, 0
          %s457 = smul.addr %s25, 8
          %s458 = scalar_lea.hbm %s1, %s457
          %s460 = sshll.u32 %s458, 4
          %s461 = int_to_ptr.hbm [resolvable:$true] %s460
          %s462 = sshll.u32 %s454, 4
          %s463 = int_to_ptr.vmem [resolvable:$true] %s462
          %465 = dma.hbm_to_vmem [thread:$0]  %s461, 128, %s463, %s451
        $region60: #{tpu_custom_call.1} parent=51 // pred_fallthru
          _
        // Predicated region
        $region61: #{tpu_custom_call.1} parent=51 // pred_check
          %p466 = pneg %p97
        $region62: #{tpu_custom_call.1} parent=51 // pred_check_branch
          %468 = sbr.rel (%p466) target = $region64
        $region63: #{tpu_custom_call.1} parent=51 // pred_region
          %p469 = scmp.lt.s32.totalorder %s25, 1
          %s470 = scalar_select %p469, %s25, 1
          %s471 = smul.addr %s470, 2
          %s472 = smul.addr %s471, 8
          %s473 = scalar_lea.vmem %s2, %s472
        $region64: #{tpu_custom_call.1} parent=51 // pred_fallthru
          _
        // Predicated region
        $region65: #{tpu_custom_call.1} parent=51 // pred_check
          %p474 = pneg %p123
        $region66: #{tpu_custom_call.1} parent=51 // pred_check_branch
          %476 = sbr.rel (%p474) target = $region68
        $region67: #{tpu_custom_call.1} parent=51 // pred_region
          %p477 = scmp.lt.s32.totalorder %s25, 1
          %s478 = scalar_select %p477, %s25, 1
          %s479 = smul.addr %s478, 4
          %s480 = smul.addr %s479, 8
          %s481 = scalar_lea.vmem %s3, %s480
        $region68: #{tpu_custom_call.1} parent=51 // pred_fallthru
          _
      $region52: #{tpu_custom_call.1} parent=5 // pred_fallthru
        _
      %p482 = scmp.le.s32.totalorder 1, %s25
      %p483 = scmp.lt.s32.totalorder %s25, 3
      %p484 = pnand %p482, %p483
      %p485 = pneg %p484
      // Predicated region
      $region69: #{tpu_custom_call.1} parent=5 // pred_check
        _
      $region70: #{tpu_custom_call.1} parent=5 // pred_check_branch
        %487 = sbr.rel (%p484) target = $region72
      $region71: #{tpu_custom_call.1} parent=5 // pred_region
        %s488 = ssub.s32 %s25, 1
        %s489 = sand.u32 %s64, 1
        %s490 = scalar_lea.sflag [#allocation3], %s489
        %s491 = sand.u32 %s64, 1
        %s492 = smul.addr %s491, 8
        %s493 = scalar_lea.vmem [#allocation2], %s492
        // Predicated region
        $region73: #{tpu_custom_call.1} parent=71 // pred_check
          %p494 = pneg %p77
        $region74: #{tpu_custom_call.1} parent=71 // pred_check_branch
          %496 = sbr.rel (%p494) target = $region76
        $region75: #{tpu_custom_call.1} parent=71 // pred_region
          %498 = dma.done %s490, 128
        $region76: #{tpu_custom_call.1} parent=71 // pred_fallthru
          _
        // Predicated region
        $region77: #{tpu_custom_call.1} parent=71 // pred_check
          %p499 = pneg %p192
        $region78: #{tpu_custom_call.1} parent=71 // pred_check_branch
          %501 = sbr.rel (%p499) target = $region80
        $region79: #{tpu_custom_call.1} parent=71 // pred_region
          %503 = dma.done [#allocation5], 128
        $region80: #{tpu_custom_call.1} parent=71 // pred_fallthru
          _
        // Predicated region
        $region81: #{tpu_custom_call.1} parent=71 // pred_check
          %p504 = pneg %p213
        $region82: #{tpu_custom_call.1} parent=71 // pred_check_branch
          %506 = sbr.rel (%p504) target = $region84
        $region83: #{tpu_custom_call.1} parent=71 // pred_region
          %508 = dma.done [#allocation5], 128
        $region84: #{tpu_custom_call.1} parent=71 // pred_fallthru
          _
        // Predicated region
        $region85: #{tpu_custom_call.1} parent=71 // pred_check
          %p509 = pneg %p234
        $region86: #{tpu_custom_call.1} parent=71 // pred_check_branch
          %511 = sbr.rel (%p509) target = $region88
        $region87: #{tpu_custom_call.1} parent=71 // pred_region
          %513 = dma.done [#allocation8], 2048
        $region88: #{tpu_custom_call.1} parent=71 // pred_fallthru
          _
        // Predicated region
        $region89: #{tpu_custom_call.1} parent=71 // pred_check
          %p514 = pneg %p276
        $region90: #{tpu_custom_call.1} parent=71 // pred_check_branch
          %516 = sbr.rel (%p514) target = $region92
        $region91: #{tpu_custom_call.1} parent=71 // pred_region
          %518 = dma.done [#allocation8], 128
        $region92: #{tpu_custom_call.1} parent=71 // pred_fallthru
          _
        // Predicated region
        $region93: #{tpu_custom_call.1} parent=71 // pred_check
          %p519 = pneg %p297
        $region94: #{tpu_custom_call.1} parent=71 // pred_check_branch
          %521 = sbr.rel (%p519) target = $region96
        $region95: #{tpu_custom_call.1} parent=71 // pred_region
          %523 = dma.done [#allocation11], 8192
        $region96: #{tpu_custom_call.1} parent=71 // pred_fallthru
          _
        %p524 = scmp.lt.s32.totalorder %s30, 1
        %s525 = scalar_select %p524, %s30, 1
        %s526 = smul.addr %s525, 2
        %s527 = smul.addr %s526, 4
        %s528 = scalar_lea.vmem %s0, %s527
        %p529 = pneg %p51
        %p530 = pneg %p48
        %s531 = sand.u32 %s64, 1
        %s532 = scalar_lea.sflag [#allocation3], %s531
        %s533 = sand.u32 %s64, 1
        %s534 = smul.addr %s533, 8
        %s535 = scalar_lea.vmem [#allocation2], %s534
        %p536 = pneg %p77
        %p537 = pneg %p74
        %p538 = scmp.lt.s32.totalorder %s30, 1
        %s539 = scalar_select %p538, %s30, 1
        %s540 = smul.addr %s539, 2
        %s541 = smul.addr %s540, 8
        %s542 = scalar_lea.vmem %s2, %s541
        %p543 = pneg %p103
        %p544 = pneg %p100
        %p545 = scmp.lt.s32.totalorder %s30, 1
        %s546 = scalar_select %p545, %s30, 1
        %s547 = smul.addr %s546, 4
        %s548 = smul.addr %s547, 8
        %s549 = scalar_lea.vmem %s3, %s548
        %p550 = pneg %p129
        %p551 = pneg %p126
        %p552 = pneg %p150
        %p553 = pneg %p147
        %p554 = pneg %p171
        %p555 = pneg %p168
        %p556 = pneg %p192
        %p557 = pneg %p189
        %p558 = pneg %p213
        %p559 = pneg %p210
        %p560 = pneg %p234
        %p561 = pneg %p231
        %p562 = pneg %p255
        %p563 = pneg %p252
        %p564 = pneg %p276
        %p565 = pneg %p273
        %p566 = pneg %p297
        %p567 = pneg %p294
        %p568 = pneg %p318
        %p569 = pneg %p315
        %p570 = pneg %p344
        %p571 = pneg %p341
        %p572 = scmp.lt.s32.totalorder %s30, 1
        %s573 = scalar_select %p572, %s30, 1
        %s574 = smul.addr %s573, 2
        %s575 = smul.addr %s574, 8
        %s576 = scalar_lea.vmem %s13, %s575
        %p577 = scmp.lt.s32.totalorder %s30, 1
        %s578 = scalar_select %p577, %s30, 1
        %s579 = smul.addr %s578, 2
        %s580 = smul.addr %s579, 4
        %s581 = scalar_lea.vmem %s0, %s580
        %p582 = scmp.lt.s32.totalorder %s30, 1
        %s583 = scalar_select %p582, %s30, 1
        %s584 = smul.addr %s583, 2
        %s585 = smul.addr %s584, 8
        %s586 = scalar_lea.vmem %s2, %s585
        %p587 = scmp.lt.s32.totalorder %s30, 1
        %s588 = scalar_select %p587, %s30, 1
        %s589 = smul.addr %s588, 4
        %s590 = smul.addr %s589, 8
        %s591 = scalar_lea.vmem %s3, %s590
        %p592 = scmp.lt.s32.totalorder %s30, 1
        %s593 = scalar_select %p592, %s30, 1
        %s594 = smul.addr %s593, 2
        %s595 = smul.addr %s594, 8
        %s596 = scalar_lea.vmem %s13, %s595
        %v597 = vld [vmem:[%s4] sm:$0x1f]
        %v598 = vld [vmem:[%s581] sm:$0xff]
        %v599 = vld [vmem:[%s5] sm:$0x1f]
        %v600 = vld [vmem:[%s493] sm:$0xff]
        %vm601 = vcmask 64512
        %v603 = vsel %vm601, %v599, 0
        %605 = vmatpush.msra.mxu0 0.0
        %606 = vmatpush.msra.mxu0 0.0
        %607 = vmatpush.msra.mxu0 0.0
        %608 = vmatpush.msra.mxu0 0.0
        %609 = vmatpush.msra.mxu0 0.0
        %610 = vmatpush.msra.mxu0 0.0
        %611 = vmatpush.msra.mxu0 0.0
        %612 = vmatpush.msra.mxu0 0.0
        %613 = vmatpush.msra.mxu0 0.0
        %614 = vmatpush.msra.mxu0 0.0
        %615 = vmatpush.msra.mxu0 0.0
        %616 = vmatpush.msra.mxu0 0.0
        %617 = vmatpush.msra.mxu0 0.0
        %618 = vmatpush.msra.mxu0 0.0
        %619 = vmatpush.msra.mxu0 0.0
        %620 = vmatpush.msra.mxu0 %v600
        %621 = vmatmul.f32.gmra.mxu0 %v603
        %v622 = vpop.f32.mrf.mxu0
        %v623 = vadd.f32 0.0, %v622
        %624 = vdwg.mxu0
        %v625 = vld [vmem:[#allocation7] sm:$0xff]
        %v626 = vld [vmem:[#allocation7 + $0x8] sm:$0xff]
        %v627 = vld [vmem:[#allocation7 + $0x10] sm:$0xff]
        %v628 = vld [vmem:[#allocation7 + $0x18] sm:$0xff]
        %v629 = vld [vmem:[#allocation7 + $0x20] sm:$0xff]
        %v630 = vld [vmem:[#allocation7 + $0x28] sm:$0xff]
        %v631 = vld [vmem:[#allocation7 + $0x30] sm:$0xff]
        %v632 = vld [vmem:[#allocation7 + $0x38] sm:$0xff]
        %v633 = vld [vmem:[#allocation7 + $0x40] sm:$0xff]
        %v634 = vld [vmem:[#allocation7 + $0x48] sm:$0xff]
        %v635 = vld [vmem:[#allocation7 + $0x50] sm:$0xff]
        %v636 = vld [vmem:[#allocation7 + $0x58] sm:$0xff]
        %v637 = vld [vmem:[#allocation7 + $0x60] sm:$0xff]
        %v638 = vld [vmem:[#allocation7 + $0x68] sm:$0xff]
        %v639 = vld [vmem:[#allocation7 + $0x70] sm:$0xff]
        %v640 = vld [vmem:[#allocation7 + $0x78] sm:$0xff]
        %vm641 = vcmask 523264
        %v643 = vsel %vm641, %v623, 0
        %645 = vmatpush.msra.mxu0 0.0
        %646 = vmatpush.msra.mxu0 0.0
        %647 = vmatpush.msra.mxu0 0.0
        %648 = vmatpush.msra.mxu0 0.0
        %649 = vmatpush.msra.mxu0 0.0
        %650 = vmatpush.msra.mxu0 0.0
        %651 = vmatpush.msra.mxu0 0.0
        %652 = vmatpush.msra.mxu0 0.0
        %653 = vmatpush.msra.mxu0 %v639
        %654 = vmatpush.msra.mxu0 %v637
        %655 = vmatpush.msra.mxu0 %v635
        %656 = vmatpush.msra.mxu0 %v633
        %657 = vmatpush.msra.mxu0 %v631
        %658 = vmatpush.msra.mxu0 %v629
        %659 = vmatpush.msra.mxu0 %v627
        %660 = vmatpush.msra.mxu0 %v625
        %661 = vmatmul.f32.gmra.mxu0 %v643
        %v662 = vpop.f32.mrf.mxu0
        %v663 = vadd.f32 0.0, %v662
        %664 = vdwg.mxu0
        %665 = vmatpush.msra.mxu0 0.0
        %666 = vmatpush.msra.mxu0 0.0
        %667 = vmatpush.msra.mxu0 0.0
        %668 = vmatpush.msra.mxu0 0.0
        %669 = vmatpush.msra.mxu0 0.0
        %670 = vmatpush.msra.mxu0 0.0
        %671 = vmatpush.msra.mxu0 0.0
        %672 = vmatpush.msra.mxu0 0.0
        %673 = vmatpush.msra.mxu0 %v640
        %674 = vmatpush.msra.mxu0 %v638
        %675 = vmatpush.msra.mxu0 %v636
        %676 = vmatpush.msra.mxu0 %v634
        %677 = vmatpush.msra.mxu0 %v632
        %678 = vmatpush.msra.mxu0 %v630
        %679 = vmatpush.msra.mxu0 %v628
        %680 = vmatpush.msra.mxu0 %v626
        %681 = vmatmul.f32.gmra.mxu0 %v643
        %v682 = vpop.f32.mrf.mxu0
        %v683 = vadd.f32 0.0, %v682
        %684 = vdwg.mxu0
        %686 = vst [vmem:[#allocation1] ss:$2 sm:$0xff] %v598
        %v687 = vld.sshfl [vmem:[#allocation1] sm:$0xff pattern:$0x75316420]
        %v688 = vld.sshfl [vmem:[#allocation1 + $0x8] sm:$0xff pattern:$0x75316420]
        %vm689 = vcmask 31744
        %v691 = vsel %vm689, %v597, 0
        %vm693 = vcmask 1043456
        %v694 = vsel %vm693, %v687, 0
        %v696 = vsel %vm693, %v688, 0
        %698 = vmatpush.msra.mxu0 0.0
        %699 = vmatpush.msra.mxu0 0.0
        %700 = vmatpush.msra.mxu0 0.0
        %701 = vmatpush.msra.mxu0 0.0
        %702 = vmatpush.msra.mxu0 0.0
        %703 = vmatpush.msra.mxu0 0.0
        %704 = vmatpush.msra.mxu0 0.0
        %705 = vmatpush.msra.mxu0 0.0
        %706 = vmatpush.msra.mxu0 0.0
        %707 = vmatpush.msra.mxu0 0.0
        %708 = vmatpush.msra.mxu0 0.0
        %709 = vmatpush.msra.mxu0 0.0
        %710 = vmatpush.msra.mxu0 0.0
        %711 = vmatpush.msra.mxu0 0.0
        %712 = vmatpush.msra.mxu0 0.0
        %713 = vmatpush.msra.mxu0 %v694
        %714 = vmatmul.f32.gmra.mxu0 %v691
        %v715 = vpop.f32.mrf.mxu0
        %v716 = vadd.f32 %v663, %v715
        %717 = vdwg.mxu0
        %718 = vmatpush.msra.mxu0 0.0
        %719 = vmatpush.msra.mxu0 0.0
        %720 = vmatpush.msra.mxu0 0.0
        %721 = vmatpush.msra.mxu0 0.0
        %722 = vmatpush.msra.mxu0 0.0
        %723 = vmatpush.msra.mxu0 0.0
        %724 = vmatpush.msra.mxu0 0.0
        %725 = vmatpush.msra.mxu0 0.0
        %726 = vmatpush.msra.mxu0 0.0
        %727 = vmatpush.msra.mxu0 0.0
        %728 = vmatpush.msra.mxu0 0.0
        %729 = vmatpush.msra.mxu0 0.0
        %730 = vmatpush.msra.mxu0 0.0
        %731 = vmatpush.msra.mxu0 0.0
        %732 = vmatpush.msra.mxu0 0.0
        %733 = vmatpush.msra.mxu0 %v696
        %734 = vmatmul.f32.gmra.mxu0 %v691
        %v735 = vpop.f32.mrf.mxu0
        %v736 = vadd.f32 %v683, %v735
        %737 = vdwg.mxu0
        %v738 = vld [vmem:[#allocation4] sm:$0x1f]
        %v739 = vld [vmem:[%s586] sm:$0xff]
        %v740 = vld [vmem:[%s586 + $0x8] sm:$0xff]
        %vm741 = vcmask 130048
        %v743 = vsel %vm741, %v738, 0
        %745 = vmatpush.msra.mxu0 0.0
        %746 = vmatpush.msra.mxu0 0.0
        %747 = vmatpush.msra.mxu0 0.0
        %748 = vmatpush.msra.mxu0 0.0
        %749 = vmatpush.msra.mxu0 0.0
        %750 = vmatpush.msra.mxu0 0.0
        %751 = vmatpush.msra.mxu0 0.0
        %752 = vmatpush.msra.mxu0 0.0
        %753 = vmatpush.msra.mxu0 0.0
        %754 = vmatpush.msra.mxu0 0.0
        %755 = vmatpush.msra.mxu0 0.0
        %756 = vmatpush.msra.mxu0 0.0
        %757 = vmatpush.msra.mxu0 0.0
        %758 = vmatpush.msra.mxu0 0.0
        %759 = vmatpush.msra.mxu0 %v740
        %760 = vmatpush.msra.mxu0 %v739
        %761 = vmatmul.f32.gmra.mxu0 %v743
        %v762 = vpop.f32.mrf.mxu0
        %v763 = vadd.f32 0.0, %v762
        %764 = vdwg.mxu0
        %v765 = vld [vmem:[%s9] sm:$0xff]
        %v766 = vld [vmem:[%s9 + $0x8] sm:$0xff]
        %v767 = vld [vmem:[%s9 + $0x10] sm:$0xff]
        %v768 = vld [vmem:[%s9 + $0x18] sm:$0xff]
        %v770 = vsel %vm741, %v763, 0
        %772 = vmatpush.msra.mxu0 0.0
        %773 = vmatpush.msra.mxu0 0.0
        %774 = vmatpush.msra.mxu0 0.0
        %775 = vmatpush.msra.mxu0 0.0
        %776 = vmatpush.msra.mxu0 0.0
        %777 = vmatpush.msra.mxu0 0.0
        %778 = vmatpush.msra.mxu0 0.0
        %779 = vmatpush.msra.mxu0 0.0
        %780 = vmatpush.msra.mxu0 0.0
        %781 = vmatpush.msra.mxu0 0.0
        %782 = vmatpush.msra.mxu0 0.0
        %783 = vmatpush.msra.mxu0 0.0
        %784 = vmatpush.msra.mxu0 0.0
        %785 = vmatpush.msra.mxu0 0.0
        %786 = vmatpush.msra.mxu0 %v767
        %787 = vmatpush.msra.mxu0 %v765
        %788 = vmatmul.f32.gmra.mxu0 %v770
        %v789 = vpop.f32.mrf.mxu0
        %v790 = vadd.f32 0.0, %v789
        %791 = vdwg.mxu0
        %792 = vmatpush.msra.mxu0 0.0
        %793 = vmatpush.msra.mxu0 0.0
        %794 = vmatpush.msra.mxu0 0.0
        %795 = vmatpush.msra.mxu0 0.0
        %796 = vmatpush.msra.mxu0 0.0
        %797 = vmatpush.msra.mxu0 0.0
        %798 = vmatpush.msra.mxu0 0.0
        %799 = vmatpush.msra.mxu0 0.0
        %800 = vmatpush.msra.mxu0 0.0
        %801 = vmatpush.msra.mxu0 0.0
        %802 = vmatpush.msra.mxu0 0.0
        %803 = vmatpush.msra.mxu0 0.0
        %804 = vmatpush.msra.mxu0 0.0
        %805 = vmatpush.msra.mxu0 0.0
        %806 = vmatpush.msra.mxu0 %v768
        %807 = vmatpush.msra.mxu0 %v766
        %808 = vmatmul.f32.gmra.mxu0 %v770
        %v809 = vpop.f32.mrf.mxu0
        %v810 = vadd.f32 0.0, %v809
        %811 = vdwg.mxu0
        %v812 = vadd.f32 %v716, %v790
        %v813 = vadd.f32 %v736, %v810
        %v814 = vld [vmem:[#allocation6] sm:$0x1f]
        %v815 = vld [vmem:[%s591] sm:$0xff]
        %v816 = vld [vmem:[%s591 + $0x8] sm:$0xff]
        %v817 = vld [vmem:[%s591 + $0x10] sm:$0xff]
        %v818 = vld [vmem:[%s591 + $0x18] sm:$0xff]
        %vm819 = vcmask 261120
        %v821 = vsel %vm819, %v814, 0
        %823 = vmatpush.msra.mxu0 0.0
        %824 = vmatpush.msra.mxu0 0.0
        %825 = vmatpush.msra.mxu0 0.0
        %826 = vmatpush.msra.mxu0 0.0
        %827 = vmatpush.msra.mxu0 0.0
        %828 = vmatpush.msra.mxu0 0.0
        %829 = vmatpush.msra.mxu0 0.0
        %830 = vmatpush.msra.mxu0 0.0
        %831 = vmatpush.msra.mxu0 0.0
        %832 = vmatpush.msra.mxu0 0.0
        %833 = vmatpush.msra.mxu0 0.0
        %834 = vmatpush.msra.mxu0 0.0
        %835 = vmatpush.msra.mxu0 %v818
        %836 = vmatpush.msra.mxu0 %v817
        %837 = vmatpush.msra.mxu0 %v816
        %838 = vmatpush.msra.mxu0 %v815
        %839 = vmatmul.f32.gmra.mxu0 %v821
        %v840 = vpop.f32.mrf.mxu0
        %v841 = vadd.f32 0.0, %v840
        %842 = vdwg.mxu0
        %v843 = vld [vmem:[#allocation9] sm:$0xff]
        %845 = vst [vmem:[#allocation1] ss:$2 sm:$0xff] %v843
        %v846 = vld.sshfl [vmem:[#allocation1] sm:$0xff pattern:$0x75316420]
        %v847 = vld.sshfl [vmem:[#allocation1 + $0x8] sm:$0xff pattern:$0x75316420]
        %v849 = vsel %vm689, %v841, 0
        %v851 = vsel %vm693, %v846, 0
        %v853 = vsel %vm693, %v847, 0
        %855 = vmatpush.msra.mxu0 0.0
        %856 = vmatpush.msra.mxu0 0.0
        %857 = vmatpush.msra.mxu0 0.0
        %858 = vmatpush.msra.mxu0 0.0
        %859 = vmatpush.msra.mxu0 0.0
        %860 = vmatpush.msra.mxu0 0.0
        %861 = vmatpush.msra.mxu0 0.0
        %862 = vmatpush.msra.mxu0 0.0
        %863 = vmatpush.msra.mxu0 0.0
        %864 = vmatpush.msra.mxu0 0.0
        %865 = vmatpush.msra.mxu0 0.0
        %866 = vmatpush.msra.mxu0 0.0
        %867 = vmatpush.msra.mxu0 0.0
        %868 = vmatpush.msra.mxu0 0.0
        %869 = vmatpush.msra.mxu0 0.0
        %870 = vmatpush.msra.mxu0 %v851
        %871 = vmatmul.f32.gmra.mxu0 %v849
        %v872 = vpop.f32.mrf.mxu0
        %v873 = vadd.f32 0.0, %v872
        %874 = vdwg.mxu0
        %875 = vmatpush.msra.mxu0 0.0
        %876 = vmatpush.msra.mxu0 0.0
        %877 = vmatpush.msra.mxu0 0.0
        %878 = vmatpush.msra.mxu0 0.0
        %879 = vmatpush.msra.mxu0 0.0
        %880 = vmatpush.msra.mxu0 0.0
        %881 = vmatpush.msra.mxu0 0.0
        %882 = vmatpush.msra.mxu0 0.0
        %883 = vmatpush.msra.mxu0 0.0
        %884 = vmatpush.msra.mxu0 0.0
        %885 = vmatpush.msra.mxu0 0.0
        %886 = vmatpush.msra.mxu0 0.0
        %887 = vmatpush.msra.mxu0 0.0
        %888 = vmatpush.msra.mxu0 0.0
        %889 = vmatpush.msra.mxu0 0.0
        %890 = vmatpush.msra.mxu0 %v853
        %891 = vmatmul.f32.gmra.mxu0 %v849
        %v892 = vpop.f32.mrf.mxu0
        %v893 = vadd.f32 0.0, %v892
        %894 = vdwg.mxu0
        %v895 = vadd.f32 %v812, %v873
        %v896 = vadd.f32 %v813, %v893
        %v897 = vld [vmem:[#allocation10] sm:$0xff]
        %v898 = vld [vmem:[#allocation10 + $0x8] sm:$0xff]
        %v899 = vld [vmem:[#allocation10 + $0x10] sm:$0xff]
        %v900 = vld [vmem:[#allocation10 + $0x18] sm:$0xff]
        %v901 = vld [vmem:[#allocation10 + $0x20] sm:$0xff]
        %v902 = vld [vmem:[#allocation10 + $0x28] sm:$0xff]
        %v903 = vld [vmem:[#allocation10 + $0x30] sm:$0xff]
        %v904 = vld [vmem:[#allocation10 + $0x38] sm:$0xff]
        %v905 = vld [vmem:[#allocation10 + $0x40] sm:$0xff]
        %v906 = vld [vmem:[#allocation10 + $0x48] sm:$0xff]
        %v907 = vld [vmem:[#allocation10 + $0x50] sm:$0xff]
        %v908 = vld [vmem:[#allocation10 + $0x58] sm:$0xff]
        %v909 = vld [vmem:[#allocation10 + $0x60] sm:$0xff]
        %v910 = vld [vmem:[#allocation10 + $0x68] sm:$0xff]
        %v911 = vld [vmem:[#allocation10 + $0x70] sm:$0xff]
        %v912 = vld [vmem:[#allocation10 + $0x78] sm:$0xff]
        %v913 = vld [vmem:[#allocation10 + $0x80] sm:$0xff]
        %v914 = vld [vmem:[#allocation10 + $0x88] sm:$0xff]
        %v915 = vld [vmem:[#allocation10 + $0x90] sm:$0xff]
        %v916 = vld [vmem:[#allocation10 + $0x98] sm:$0xff]
        %v917 = vld [vmem:[#allocation10 + $0xa0] sm:$0xff]
        %v918 = vld [vmem:[#allocation10 + $0xa8] sm:$0xff]
        %v919 = vld [vmem:[#allocation10 + $0xb0] sm:$0xff]
        %v920 = vld [vmem:[#allocation10 + $0xb8] sm:$0xff]
        %v921 = vld [vmem:[#allocation10 + $0xc0] sm:$0xff]
        %v922 = vld [vmem:[#allocation10 + $0xc8] sm:$0xff]
        %v923 = vld [vmem:[#allocation10 + $0xd0] sm:$0xff]
        %v924 = vld [vmem:[#allocation10 + $0xd8] sm:$0xff]
        %v925 = vld [vmem:[#allocation10 + $0xe0] sm:$0xff]
        %v926 = vld [vmem:[#allocation10 + $0xe8] sm:$0xff]
        %v927 = vld [vmem:[#allocation10 + $0xf0] sm:$0xff]
        %v928 = vld [vmem:[#allocation10 + $0xf8] sm:$0xff]
        %v929 = vld [vmem:[#allocation10 + $0x100] sm:$0xff]
        %v930 = vld [vmem:[#allocation10 + $0x108] sm:$0xff]
        %v931 = vld [vmem:[#allocation10 + $0x110] sm:$0xff]
        %v932 = vld [vmem:[#allocation10 + $0x118] sm:$0xff]
        %v933 = vld [vmem:[#allocation10 + $0x120] sm:$0xff]
        %v934 = vld [vmem:[#allocation10 + $0x128] sm:$0xff]
        %v935 = vld [vmem:[#allocation10 + $0x130] sm:$0xff]
        %v936 = vld [vmem:[#allocation10 + $0x138] sm:$0xff]
        %v937 = vld [vmem:[#allocation10 + $0x140] sm:$0xff]
        %v938 = vld [vmem:[#allocation10 + $0x148] sm:$0xff]
        %v939 = vld [vmem:[#allocation10 + $0x150] sm:$0xff]
        %v940 = vld [vmem:[#allocation10 + $0x158] sm:$0xff]
        %v941 = vld [vmem:[#allocation10 + $0x160] sm:$0xff]
        %v942 = vld [vmem:[#allocation10 + $0x168] sm:$0xff]
        %v943 = vld [vmem:[#allocation10 + $0x170] sm:$0xff]
        %v944 = vld [vmem:[#allocation10 + $0x178] sm:$0xff]
        %v945 = vld [vmem:[#allocation10 + $0x180] sm:$0xff]
        %v946 = vld [vmem:[#allocation10 + $0x188] sm:$0xff]
        %v947 = vld [vmem:[#allocation10 + $0x190] sm:$0xff]
        %v948 = vld [vmem:[#allocation10 + $0x198] sm:$0xff]
        %v949 = vld [vmem:[#allocation10 + $0x1a0] sm:$0xff]
        %v950 = vld [vmem:[#allocation10 + $0x1a8] sm:$0xff]
        %v951 = vld [vmem:[#allocation10 + $0x1b0] sm:$0xff]
        %v952 = vld [vmem:[#allocation10 + $0x1b8] sm:$0xff]
        %v953 = vld [vmem:[#allocation10 + $0x1c0] sm:$0xff]
        %v954 = vld [vmem:[#allocation10 + $0x1c8] sm:$0xff]
        %v955 = vld [vmem:[#allocation10 + $0x1d0] sm:$0xff]
        %v956 = vld [vmem:[#allocation10 + $0x1d8] sm:$0xff]
        %v957 = vld [vmem:[#allocation10 + $0x1e0] sm:$0xff]
        %v958 = vld [vmem:[#allocation10 + $0x1e8] sm:$0xff]
        %v959 = vld [vmem:[#allocation10 + $0x1f0] sm:$0xff]
        %v960 = vld [vmem:[#allocation10 + $0x1f8] sm:$0xff]
        %v961 = vld [vmem:[%s12] sm:$0x1f]
        %963 = vset.pattern.permute.xlu0 0
        %964 = vperm.xlu0 %963, %v961
        %v965 = vpop.permute.xlu0 %964
        %967 = vmatpush.msra.mxu0 %v927
        %968 = vmatpush.msra.mxu0 %v925
        %969 = vmatpush.msra.mxu0 %v923
        %970 = vmatpush.msra.mxu0 %v921
        %971 = vmatpush.msra.mxu0 %v919
        %972 = vmatpush.msra.mxu0 %v917
        %973 = vmatpush.msra.mxu0 %v915
        %974 = vmatpush.msra.mxu0 %v913
        %975 = vmatpush.msra.mxu0 %v911
        %976 = vmatpush.msra.mxu0 %v909
        %977 = vmatpush.msra.mxu0 %v907
        %978 = vmatpush.msra.mxu0 %v905
        %979 = vmatpush.msra.mxu0 %v903
        %980 = vmatpush.msra.mxu0 %v901
        %981 = vmatpush.msra.mxu0 %v899
        %982 = vmatpush.msra.mxu0 %v897
        %983 = vmatmul.f32.gmra.mxu0 %v895
        %v984 = vpop.f32.mrf.mxu0
        %v985 = vadd.f32 %v965, %v984
        %986 = vdwg.mxu0
        %987 = vmatpush.msra.mxu0 %v959
        %988 = vmatpush.msra.mxu0 %v957
        %989 = vmatpush.msra.mxu0 %v955
        %990 = vmatpush.msra.mxu0 %v953
        %991 = vmatpush.msra.mxu0 %v951
        %992 = vmatpush.msra.mxu0 %v949
        %993 = vmatpush.msra.mxu0 %v947
        %994 = vmatpush.msra.mxu0 %v945
        %995 = vmatpush.msra.mxu0 %v943
        %996 = vmatpush.msra.mxu0 %v941
        %997 = vmatpush.msra.mxu0 %v939
        %998 = vmatpush.msra.mxu0 %v937
        %999 = vmatpush.msra.mxu0 %v935
        %1000 = vmatpush.msra.mxu0 %v933
        %1001 = vmatpush.msra.mxu0 %v931
        %1002 = vmatpush.msra.mxu0 %v929
        %1003 = vmatmul.f32.gmra.mxu0 %v896
        %v1004 = vpop.f32.mrf.mxu0
        %v1005 = vadd.f32 %v985, %v1004
        %1006 = vdwg.mxu0
        %1007 = vmatpush.msra.mxu0 %v928
        %1008 = vmatpush.msra.mxu0 %v926
        %1009 = vmatpush.msra.mxu0 %v924
        %1010 = vmatpush.msra.mxu0 %v922
        %1011 = vmatpush.msra.mxu0 %v920
        %1012 = vmatpush.msra.mxu0 %v918
        %1013 = vmatpush.msra.mxu0 %v916
        %1014 = vmatpush.msra.mxu0 %v914
        %1015 = vmatpush.msra.mxu0 %v912
        %1016 = vmatpush.msra.mxu0 %v910
        %1017 = vmatpush.msra.mxu0 %v908
        %1018 = vmatpush.msra.mxu0 %v906
        %1019 = vmatpush.msra.mxu0 %v904
        %1020 = vmatpush.msra.mxu0 %v902
        %1021 = vmatpush.msra.mxu0 %v900
        %1022 = vmatpush.msra.mxu0 %v898
        %1023 = vmatmul.f32.gmra.mxu0 %v895
        %v1024 = vpop.f32.mrf.mxu0
        %v1025 = vadd.f32 %v965, %v1024
        %1026 = vdwg.mxu0
        %1027 = vmatpush.msra.mxu0 %v960
        %1028 = vmatpush.msra.mxu0 %v958
        %1029 = vmatpush.msra.mxu0 %v956
        %1030 = vmatpush.msra.mxu0 %v954
        %1031 = vmatpush.msra.mxu0 %v952
        %1032 = vmatpush.msra.mxu0 %v950
        %1033 = vmatpush.msra.mxu0 %v948
        %1034 = vmatpush.msra.mxu0 %v946
        %1035 = vmatpush.msra.mxu0 %v944
        %1036 = vmatpush.msra.mxu0 %v942
        %1037 = vmatpush.msra.mxu0 %v940
        %1038 = vmatpush.msra.mxu0 %v938
        %1039 = vmatpush.msra.mxu0 %v936
        %1040 = vmatpush.msra.mxu0 %v934
        %1041 = vmatpush.msra.mxu0 %v932
        %1042 = vmatpush.msra.mxu0 %v930
        %1043 = vmatmul.f32.gmra.mxu0 %v896
        %v1044 = vpop.f32.mrf.mxu0
        %v1045 = vadd.f32 %v1025, %v1044
        %1046 = vdwg.mxu0
        %1047 = vst [vmem:[%s596] sm:$0x1f] %v1005
        %1048 = vst [vmem:[%s596 + $0x8] sm:$0x1f] %v1045
        %p1049 = scmp.lt.s32.totalorder %s30, 1
        %s1050 = scalar_select %p1049, %s30, 1
        %s1051 = smul.addr %s1050, 2
        %s1052 = smul.addr %s1051, 8
        %s1053 = scalar_lea.vmem %s13, %s1052
        // Predicated region
        $region97: #{tpu_custom_call.1} parent=71 // pred_check
          %p1054 = pneg %p341
        $region98: #{tpu_custom_call.1} parent=71 // pred_check_branch
          %1056 = sbr.rel (%p1054) target = $region100
        $region99: #{tpu_custom_call.1} parent=71 // pred_region
          _
        $region100: #{tpu_custom_call.1} parent=71 // pred_fallthru
          _
      $region72: #{tpu_custom_call.1} parent=5 // pred_fallthru
        _
      %p1057 = scmp.le.s32.totalorder 2, %s25
      // Predicated region
      $region101: #{tpu_custom_call.1} parent=5 // pred_check
        %p1058 = pneg %p1057
      $region102: #{tpu_custom_call.1} parent=5 // pred_check_branch
        %1060 = sbr.rel (%p1058) target = $region104
      $region103: #{tpu_custom_call.1} parent=5 // pred_region
        %s1061 = ssub.s32 %s25, 2
        // Predicated region
        $region105: #{tpu_custom_call.1} parent=103 // pred_check
          %p1062 = pneg %p347
        $region106: #{tpu_custom_call.1} parent=103 // pred_check_branch
          %1064 = sbr.rel (%p1062) target = $region108
        $region107: #{tpu_custom_call.1} parent=103 // pred_region
          %p1065 = scmp.lt.s32.totalorder %s31, 1
          %s1066 = scalar_select %p1065, %s31, 1
          %s1067 = smul.addr %s1066, 2
          %s1068 = smul.addr %s1067, 8
          %s1069 = scalar_lea.vmem %s13, %s1068
        $region108: #{tpu_custom_call.1} parent=103 // pred_fallthru
          _
      $region104: #{tpu_custom_call.1} parent=5 // pred_fallthru
        _
    $region6: #{tpu_custom_call.1} parent=1 // loop_footer
      %s29 = sadd.s32 1, %s25
    $region7: #{tpu_custom_call.1} parent=1 // loop_footer_branch
      %24 = sbr.rel target = $region3
    $region8: #{tpu_custom_call.1} parent=1 // loop_exit
      _
    %1070 = vsyncpa [#allocation3], 1
    %s1071 = scalar_lea.sflag [#allocation3], 1
    %1072 = vsyncpa %s1071, 1
    %1073 = vsyncpa [#allocation5], 1
    %1074 = vsyncpa [#allocation8], 1
    %1075 = vsyncpa [#allocation11], 1

</llo_original>
